<compile_context>
chip_gen: v5e
topology: v5e:2x2
jax: 0.10.0
libtpu: 0.0.40
codegen_flags: <defaults>
</compile_context>

<pallas_src>
import functools

import jax
import jax.numpy as jnp
from jax.experimental import pallas as pl
from jax.experimental.pallas import tpu as pltpu

_LANE = 128


def _round_up(x, m):
    return (x + m - 1) // m * m


def _pick_tk(n128):
    # Largest reduction tile (<=2048) whose padding waste stays under ~1/16.
    for cand in (2048, 1024, 512, 256, 128):
        if cand <= n128 and _round_up(n128, cand) - n128 <= n128 // 16:
            return cand
    return 128


def _gcn_block_kernel(*refs, apply_w, apply_dropout, f_resident, tk, inv_keep):
    it = iter(refs)
    a_ref = next(it)                              # (TM, TK)  bf16  A_hat tile
    f_ref = next(it)                              # features  bf16  (resident or streamed)
    b_ref = next(it)                              # (1, FO)   f32   bias
    w_ref = next(it) if apply_w else None         # (FI, FO)  f32   (only if not folded)
    m_ref = next(it) if apply_dropout else None   # (TM, FO)  bf16  keep-mask {0,1}
    o_ref = next(it)                              # (TM, FO)  f32   output (resident over k)
    acc_ref = next(it) if apply_w else None       # (TM, FI)  f32   scratch (only if W in-kernel)

    k = pl.program_id(1)
    acc = acc_ref if apply_w else o_ref           # fold-W path accumulates in o_ref

    @pl.when(k == 0)
    def _init():
        acc[...] = jnp.zeros_like(acc)

    if f_resident:
        start = pl.multiple_of(k * tk, tk)
        f_blk = f_ref[pl.ds(start, tk), :]
    else:
        f_blk = f_ref[...]

    # Aggregation: bf16 operands, f32 accumulate on the MXU.
    acc[...] += jnp.dot(a_ref[...], f_blk, preferred_element_type=jnp.float32)

    @pl.when(k == pl.num_programs(1) - 1)
    def _finalize():
        if apply_w:
            # Small per-row-strip matmul, kept in f32 (no second rounding).
            out = jnp.dot(acc_ref[...], w_ref[...],
                          preferred_element_type=jnp.float32)
        else:
            out = o_ref[...]
        out = out + b_ref[...]
        out = jnp.maximum(out, 0.0)               # ReLU (f32 VPU, safe on v5e)
        if apply_dropout:
            out = out * (m_ref[...].astype(jnp.float32) * inv_keep)
        o_ref[...] = out


@functools.partial(jax.jit, static_argnames=("dropout_rate", "training"))
def _gcn_block_forward(x, edge_index, weight, bias, rng_key, dropout_rate,
                       training):
    N, in_dim = x.shape
    out_dim = weight.shape[1]

    fi = _round_up(in_dim, _LANE)
    fo = _round_up(out_dim, _LANE)

    # ---- tile selection: big reduction tile TK, row tile TM split for 2 TCs ----
    n128 = _round_up(N, _LANE)
    tk = _pick_tk(n128)
    n_pad = _round_up(n128, tk)
    tm = tk if n_pad // tk >= 2 else max(n_pad // 2, 8)
    m_steps = n_pad // tm
    k_steps = n_pad // tk

    # ---- matmul order decided on *padded* dims: fold W on host unless the
    #      padded input width is strictly smaller than the padded output ----
    apply_w = fi < fo
    f_dim, f_pad = (in_dim, fi) if apply_w else (out_dim, fo)

    # ---- fused glue: scatter straight into padded buffer, normalize + bf16 ----
    src, dst = edge_index[0], edge_index[1]
    loops = jnp.arange(N, dtype=edge_index.dtype)
    rows = jnp.concatenate([dst, loops])
    cols = jnp.concatenate([src, loops])
    a = jnp.zeros((n_pad, n_pad), jnp.float32).at[rows, cols].add(1.0)
    deg = a.sum(axis=1)
    dinv = jnp.where(deg > 0, jax.lax.rsqrt(deg), 0.0)
    a_p = (dinv[:, None] * a * dinv[None, :]).astype(jnp.bfloat16)

    feat = x if apply_w else jnp.dot(x, weight)          # fold W in f32 on host
    f_p = jnp.zeros((n_pad, f_pad), jnp.bfloat16).at[:N, :f_dim].set(
        feat.astype(jnp.bfloat16))
    b_p = jnp.zeros((1, fo), jnp.float32).at[0, :out_dim].set(
        bias.astype(jnp.float32))

    # Features VMEM-resident (fetched once) when small enough.
    f_resident = n_pad * f_pad * 2 <= 4 * 1024 * 1024

    apply_dropout = bool(training and dropout_rate > 0.0)
    inv_keep = float(1.0 / (1.0 - dropout_rate)) if apply_dropout else 1.0

    # ---- BlockSpecs ----
    if k_steps >= 3:   # DMA-limited pipeline: keep >=2 A-tile DMAs in flight
        a_spec = pl.BlockSpec((tm, tk), lambda i, k: (i, k),
                              pipeline_mode=pl.Buffered(3))
        a_bufs = 3
    else:
        a_spec = pl.BlockSpec((tm, tk), lambda i, k: (i, k))
        a_bufs = 2

    if f_resident:
        f_spec = pl.BlockSpec((n_pad, f_pad), lambda i, k: (0, 0))
    else:
        f_spec = pl.BlockSpec((tk, f_pad), lambda i, k: (k, 0))

    in_specs = [a_spec, f_spec, pl.BlockSpec((1, fo), lambda i, k: (0, 0))]
    inputs = [a_p, f_p, b_p]
    scratch_shapes = []

    if apply_w:
        w_p = jnp.zeros((fi, fo), jnp.float32).at[:in_dim, :out_dim].set(
            weight.astype(jnp.float32))
        in_specs.append(pl.BlockSpec((fi, fo), lambda i, k: (0, 0)))
        inputs.append(w_p)
        scratch_shapes.append(pltpu.VMEM((tm, fi), jnp.float32))

    if apply_dropout:
        keep = jax.random.bernoulli(rng_key, 1.0 - dropout_rate, (n_pad, fo))
        inputs.append(keep.astype(jnp.bfloat16))     # {0,1}; scale is a constant
        in_specs.append(pl.BlockSpec((tm, fo), lambda i, k: (i, 0)))

    # ---- VMEM budget -> explicit limit (>=32 MiB, capped for v7x's 64 MiB) ----
    vmem_need = (tm * tk * 2 * a_bufs
                 + (n_pad * f_pad * 2 * 2 if f_resident else tk * f_pad * 2 * 2)
                 + tm * fo * 4 * 2
                 + (tm * fo * 2 * 2 if apply_dropout else 0)
                 + (fi * fo * 4 * 2 + tm * fi * 4 if apply_w else 0)
                 + fo * 4 * 2)
    vmem_limit = int(min(max(vmem_need + 4 * 1024 * 1024, 32 * 1024 * 1024),
                         48 * 1024 * 1024))

    acc_cols = fi if apply_w else fo
    flops = 2 * n_pad * n_pad * acc_cols + (2 * n_pad * fi * fo if apply_w else 0)
    bytes_accessed = (n_pad * n_pad * 2
                      + n_pad * f_pad * 2 * (1 if f_resident else m_steps)
                      + n_pad * fo * 4
                      + (n_pad * fo * 2 if apply_dropout else 0)
                      + fo * 4)

    kernel = functools.partial(_gcn_block_kernel,
                               apply_w=apply_w,
                               apply_dropout=apply_dropout,
                               f_resident=f_resident,
                               tk=tk,
                               inv_keep=inv_keep)

    out_p = pl.pallas_call(
        kernel,
        out_shape=jax.ShapeDtypeStruct((n_pad, fo), jnp.float32),
        grid_spec=pltpu.PrefetchScalarGridSpec(
            num_scalar_prefetch=0,
            grid=(m_steps, k_steps),
            in_specs=in_specs,
            out_specs=pl.BlockSpec((tm, fo), lambda i, k: (i, 0)),
            scratch_shapes=scratch_shapes,
        ),
        compiler_params=pltpu.CompilerParams(
            dimension_semantics=("parallel", "arbitrary"),
            vmem_limit_bytes=vmem_limit,
        ),
        cost_estimate=pl.CostEstimate(
            flops=int(flops), transcendentals=0,
            bytes_accessed=int(bytes_accessed)),
    )(*inputs)

    return out_p[:N, :out_dim]


def gcn_block_forward(x, edge_index, weight, bias, *, dropout_rate=0.0,
                      training=True, rng_key=None):
    """x: [N, in_dim] f32, edge_index: [2, E] int32, weight: [in_dim, out_dim]."""
    if rng_key is None:
        rng_key = jax.random.PRNGKey(0)
    return _gcn_block_forward(x, edge_index, weight, bias, rng_key,
                              dropout_rate=float(dropout_rate),
                              training=bool(training))


if __name__ == "__main__":
    # Small deterministic problem: 64 nodes, 16 -> 32 features, 256 random edges.
    N, IN_DIM, OUT_DIM, E = 64, 16, 32, 256
    DROPOUT = 0.5

    key = jax.random.PRNGKey(0)
    kx, ke, kw, kd = jax.random.split(key, 4)

    x = jax.random.normal(kx, (N, IN_DIM), dtype=jnp.float32)
    edge_index = jax.random.randint(ke, (2, E), 0, N, dtype=jnp.int32)

    # Deterministic parameter init (glorot-uniform-ish, like PyG's GCNConv linear).
    limit = (6.0 / (IN_DIM + OUT_DIM)) ** 0.5
    weight = jax.random.uniform(kw, (IN_DIM, OUT_DIM), jnp.float32, -limit, limit)
    bias = jnp.zeros((OUT_DIM,), jnp.float32)

    out = gcn_block_forward(x, edge_index, weight, bias,
                            dropout_rate=DROPOUT, training=True, rng_key=kd)
    jax.block_until_ready(out)
    assert out.shape == (N, OUT_DIM)
    assert bool(jnp.all(out >= 0.0))          # ReLU + dropout never negative
    print("KERNEL_OK")
</pallas_src>

<mosaic_0001>
module attributes {stable_mosaic.version = 11 : i64} {
  func.func @_gcn_block_kernel(%arg0: i32, %arg1: i32, %arg2: memref<64x128xbf16, #tpu.memory_space<vmem>>, %arg3: memref<128x128xbf16, #tpu.memory_space<vmem>>, %arg4: memref<1x128xf32, #tpu.memory_space<vmem>>, %arg5: memref<64x128xbf16, #tpu.memory_space<vmem>>, %arg6: memref<64x128xf32, #tpu.memory_space<vmem>>) attributes {dimension_semantics = [#tpu.dimension_semantics<parallel>, #tpu.dimension_semantics<arbitrary>], iteration_bounds = array<i64: 2, 1>, scalar_prefetch = 0 : i64, scratch_operands = 0 : i64, tpu.core_type = #tpu.core_type<tc>, window_params = [{transform_indices = @transform_0, window_bounds = array<i64: 64, 128>}, {pipeline_mode = #tpu.pipeline_mode<synchronous>, transform_indices = @transform_1, window_bounds = array<i64: 128, 128>}, {pipeline_mode = #tpu.pipeline_mode<synchronous>, transform_indices = @transform_2, window_bounds = array<i64: 1, 128>}, {transform_indices = @transform_3, window_bounds = array<i64: 64, 128>}, {transform_indices = @transform_4, window_bounds = array<i64: 64, 128>}]} {
    %c0_i32 = arith.constant 0 : i32
    %0 = arith.cmpi eq, %arg1, %c0_i32 : i32
    %1 = arith.extui %0 : i1 to i32
    %c0_i32_0 = arith.constant 0 : i32
    %2 = arith.cmpi ne, %1, %c0_i32_0 : i32
    scf.if %2 {
      %cst_9 = arith.constant 0.000000e+00 : f32
      %15 = vector.broadcast %cst_9 : f32 to vector<64x128xf32>
      %c0_10 = arith.constant 0 : index
      %c0_11 = arith.constant 0 : index
      %16 = vector.load %arg6[%c0_10, %c0_11] : memref<64x128xf32, #tpu.memory_space<vmem>>, vector<64x128xf32>
      tpu.vector_store %arg6[%c0_10, %c0_11], %15 {strides = array<i32>} : memref<64x128xf32, #tpu.memory_space<vmem>>, vector<64x128xf32>,
    } else {
    }
    %c128_i32 = arith.constant 128 : i32
    %3 = arith.muli %arg1, %c128_i32 : i32
    %4 = tpu.assume_multiple %3, 128 : i32
    %5 = arith.index_cast %4 : i32 to index
    %c0 = arith.constant 0 : index
    %6 = vector.load %arg3[%5, %c0] : memref<128x128xbf16, #tpu.memory_space<vmem>>, vector<128x128xbf16>
    %c0_1 = arith.constant 0 : index
    %c0_2 = arith.constant 0 : index
    %7 = vector.load %arg6[%c0_1, %c0_2] : memref<64x128xf32, #tpu.memory_space<vmem>>, vector<64x128xf32>
    %c0_3 = arith.constant 0 : index
    %c0_4 = arith.constant 0 : index
    %8 = vector.load %arg2[%c0_3, %c0_4] : memref<64x128xbf16, #tpu.memory_space<vmem>>, vector<64x128xbf16>
    %cst = arith.constant dense<0.000000e+00> : vector<64x128xf32>
    %9 = tpu.matmul %8, %6, %cst {dimension_numbers = #tpu.dot_dimension_numbers<[1], [0], [0], [1], [0, 0, 1, 1], [], []>} : vector<64x128xbf16>, vector<128x128xbf16>, vector<64x128xf32> -> vector<64x128xf32>
    %10 = arith.addf %7, %9 : vector<64x128xf32>
    %c0_5 = arith.constant 0 : index
    %c0_6 = arith.constant 0 : index
    %11 = vector.load %arg6[%c0_5, %c0_6] : memref<64x128xf32, #tpu.memory_space<vmem>>, vector<64x128xf32>
    tpu.vector_store %arg6[%c0_5, %c0_6], %10 {strides = array<i32>} : memref<64x128xf32, #tpu.memory_space<vmem>>, vector<64x128xf32>,
    %c0_i32_7 = arith.constant 0 : i32
    %12 = arith.cmpi eq, %arg1, %c0_i32_7 : i32
    %13 = arith.extui %12 : i1 to i32
    %c0_i32_8 = arith.constant 0 : i32
    %14 = arith.cmpi ne, %13, %c0_i32_8 : i32
    scf.if %14 {
      %c0_9 = arith.constant 0 : index
      %c0_10 = arith.constant 0 : index
      %15 = vector.load %arg6[%c0_9, %c0_10] : memref<64x128xf32, #tpu.memory_space<vmem>>, vector<64x128xf32>
      %c0_11 = arith.constant 0 : index
      %c0_12 = arith.constant 0 : index
      %16 = vector.load %arg4[%c0_11, %c0_12] : memref<1x128xf32, #tpu.memory_space<vmem>>, vector<1x128xf32>
      %17 = vector.broadcast %16 : vector<1x128xf32> to vector<64x128xf32>
      %18 = arith.addf %15, %17 : vector<64x128xf32>
      %cst_13 = arith.constant 0.000000e+00 : f32
      %19 = vector.broadcast %cst_13 : f32 to vector<64x128xf32>
      %20 = arith.maximumf %18, %19 : vector<64x128xf32>
      %c0_14 = arith.constant 0 : index
      %c0_15 = arith.constant 0 : index
      %21 = vector.load %arg5[%c0_14, %c0_15] : memref<64x128xbf16, #tpu.memory_space<vmem>>, vector<64x128xbf16>
      %22 = arith.extf %21 : vector<64x128xbf16> to vector<64x128xf32>
      %cst_16 = arith.constant 2.000000e+00 : f32
      %23 = vector.broadcast %cst_16 : f32 to vector<64x128xf32>
      %24 = arith.mulf %22, %23 : vector<64x128xf32>
      %25 = arith.mulf %20, %24 : vector<64x128xf32>
      %c0_17 = arith.constant 0 : index
      %c0_18 = arith.constant 0 : index
      %26 = vector.load %arg6[%c0_17, %c0_18] : memref<64x128xf32, #tpu.memory_space<vmem>>, vector<64x128xf32>
      tpu.vector_store %arg6[%c0_17, %c0_18], %25 {strides = array<i32>} : memref<64x128xf32, #tpu.memory_space<vmem>>, vector<64x128xf32>,
    } else {
    }
    return
  }
  func.func @transform_0(%arg0: i32, %arg1: i32) -> (i32, i32) {
    %c0_i32 = arith.constant 0 : i32
    return %arg0, %arg1 : i32, i32
  }
  func.func @transform_1(%arg0: i32, %arg1: i32) -> (i32, i32) {
    %c0_i32 = arith.constant 0 : i32
    %c0_i32_0 = arith.constant 0 : i32
    %c0_i32_1 = arith.constant 0 : i32
    return %c0_i32, %c0_i32_0 : i32, i32
  }
  func.func @transform_2(%arg0: i32, %arg1: i32) -> (i32, i32) {
    %c0_i32 = arith.constant 0 : i32
    %c0_i32_0 = arith.constant 0 : i32
    %c0_i32_1 = arith.constant 0 : i32
    return %c0_i32, %c0_i32_0 : i32, i32
  }
  func.func @transform_3(%arg0: i32, %arg1: i32) -> (i32, i32) {
    %c0_i32 = arith.constant 0 : i32
    %c0_i32_0 = arith.constant 0 : i32
    return %arg0, %c0_i32 : i32, i32
  }
  func.func @transform_4(%arg0: i32, %arg1: i32) -> (i32, i32) {
    %c0_i32 = arith.constant 0 : i32
    %c0_i32_0 = arith.constant 0 : i32
    return %arg0, %c0_i32 : i32, i32
  }
}

</mosaic_0001>

<llo_original>
// kernel: _gcn_block_forward.1
$region0: #{_gcn_block_forward.1}
  #allocation0 [shape = 'u32[]', space=smem, size = 0x4, offset = 0x4, fixed_abs, tag = 'smem constant byte address 0x4 - core index']
  #allocation1 [shape = 'u32[72,128]{1,0:T(1,128)}', space=vmem, size = 0x9000, scoped, tag = 'internal scratch']
  %s0 = inlined_call_operand.vmem [shape: bf16[128,128], index: 0, kind: input, shape index: {}]
  %s1 = inlined_call_operand.vmem [shape: bf16[128,128], index: 1, kind: input, shape index: {}]
  %s2 = inlined_call_operand.vmem [shape: f32[1,128], index: 2, kind: input, shape index: {}]
  %s3 = inlined_call_operand.vmem [shape: bf16[128,128], index: 3, kind: input, shape index: {}]
  %s4 = inlined_call_operand.vmem [shape: f32[128,128], index: 4, kind: output, shape index: {}]
  %s5 = sld [smem:[#allocation0]]
  $region57: #{_gcn_block_forward.1} parent=0
    _
  %s7 = ssub.s32 1, %s5
  %s8 = scalar_select 0, %s7, %s5
  loop: start=0, step=1, limit=4
  $region2: #{_gcn_block_forward.1} parent=0 // loop_pre_header
    _
  $region3: #{_gcn_block_forward.1} parent=0 // loop_header
    %s10 = sphi 0, %s14
    %p11 = scmp.ge.s32.totalorder %s10, 4
    %s17 = sphi 0, %s29
    %s18 = sphi 0, %s25
    %s19 = sphi 0, %s17
    %s20 = sphi 0, %s18
    %s21 = sphi 0, %s19
    %s22 = sphi 0, %s20
    %s34 = sphi 0, %s36
    %s37 = sphi 0, %s34
    %s38 = sphi 0, %s37
    %s54 = sphi 0, %s38
    %s58 = sphi 0, %s58
    %s60 = sphi 0, %s58
    %s61 = sphi 0, %s60
    %s75 = sphi 0, %s61
    %s79 = sphi 0, %s79
    %s81 = sphi 0, %s79
    %s82 = sphi 0, %s81
    %s96 = sphi 0, %s82
    %s102 = sphi 0, %s104
    %s105 = sphi 0, %s102
    %s106 = sphi 0, %s105
    %s122 = sphi 0, %s106
    %s128 = sphi 0, %s130
    %s131 = sphi 0, %s128
    %s132 = sphi 0, %s131
    %s148 = sphi 0, %s132
  $region4: #{_gcn_block_forward.1} parent=0 // loop_header_branch
    %13 = sbr.rel (%p11) target = $region8
  $region5: #{_gcn_block_forward.1} parent=0 // loop_body
    %s15 = ssub.s32 %s10, 1
    %s16 = ssub.s32 %s10, 2
    %s23 = sadd.s32 1, %s18
    %p24 = scmp.ge.s32.totalorder %s23, 1
    %s25 = scalar_select %p24, 0, %s23
    %s26 = sadd.s32 1, %s17
    %s27 = scalar_select %p24, %s26, %s17
    %p28 = scmp.ge.s32.totalorder %s27, 2
    %s29 = scalar_select %p28, 0, %s27
    %s30 = ssub.s32 %s17, %s29
    %s31 = ssub.s32 %s18, %s25
    %s32 = sor.u32 %s30, %s31
    %p33 = scmp.eq.s32.totalorder %s32, 0
    %s35 = sadd.s32 %s34, 1
    %s36 = scalar_select %p33, %s34, %s35
    %p39 = pneg %p33
    %p40 = scmp.eq.s32.totalorder %s10, 1
    %p41 = por %p39, %p40
    %p42 = scmp.ne.s32.totalorder %s34, %s37
    %p43 = scmp.eq.s32.totalorder %s10, 0
    %p44 = por %p42, %p43
    %p45 = scmp.ne.s32.totalorder %s34, %s37
    %p46 = scmp.eq.s32.totalorder %s15, 1
    %p47 = por %p45, %p46
    %p48 = scmp.ne.s32.totalorder %s37, %s38
    %p49 = scmp.eq.s32.totalorder %s15, 0
    %p50 = por %p48, %p49
    %p51 = scmp.ne.s32.totalorder %s37, %s38
    %p52 = scmp.eq.s32.totalorder %s16, 1
    %p53 = por %p51, %p52
    %p55 = scmp.ne.s32.totalorder %s38, %s54
    %p56 = scmp.eq.s32.totalorder %s16, 0
    %p57 = por %p55, %p56
    %s59 = sadd.s32 %s58, 1
    %p62 = scmp.eq.s32.totalorder %s10, 1
    %p63 = scmp.ne.s32.totalorder %s58, %s60
    %p64 = scmp.eq.s32.totalorder %s10, 0
    %p65 = por %p63, %p64
    %p66 = scmp.ne.s32.totalorder %s58, %s60
    %p67 = scmp.eq.s32.totalorder %s15, 1
    %p68 = por %p66, %p67
    %p69 = scmp.ne.s32.totalorder %s60, %s61
    %p70 = scmp.eq.s32.totalorder %s15, 0
    %p71 = por %p69, %p70
    %p72 = scmp.ne.s32.totalorder %s60, %s61
    %p73 = scmp.eq.s32.totalorder %s16, 1
    %p74 = por %p72, %p73
    %p76 = scmp.ne.s32.totalorder %s61, %s75
    %p77 = scmp.eq.s32.totalorder %s16, 0
    %p78 = por %p76, %p77
    %s80 = sadd.s32 %s79, 1
    %p83 = scmp.eq.s32.totalorder %s10, 1
    %p84 = scmp.ne.s32.totalorder %s79, %s81
    %p85 = scmp.eq.s32.totalorder %s10, 0
    %p86 = por %p84, %p85
    %p87 = scmp.ne.s32.totalorder %s79, %s81
    %p88 = scmp.eq.s32.totalorder %s15, 1
    %p89 = por %p87, %p88
    %p90 = scmp.ne.s32.totalorder %s81, %s82
    %p91 = scmp.eq.s32.totalorder %s15, 0
    %p92 = por %p90, %p91
    %p93 = scmp.ne.s32.totalorder %s81, %s82
    %p94 = scmp.eq.s32.totalorder %s16, 1
    %p95 = por %p93, %p94
    %p97 = scmp.ne.s32.totalorder %s82, %s96
    %p98 = scmp.eq.s32.totalorder %s16, 0
    %p99 = por %p97, %p98
    %s100 = ssub.s32 %s17, %s29
    %p101 = scmp.eq.s32.totalorder %s100, 0
    %s103 = sadd.s32 %s102, 1
    %s104 = scalar_select %p101, %s102, %s103
    %p107 = pneg %p101
    %p108 = scmp.eq.s32.totalorder %s10, 1
    %p109 = por %p107, %p108
    %p110 = scmp.ne.s32.totalorder %s102, %s105
    %p111 = scmp.eq.s32.totalorder %s10, 0
    %p112 = por %p110, %p111
    %p113 = scmp.ne.s32.totalorder %s102, %s105
    %p114 = scmp.eq.s32.totalorder %s15, 1
    %p115 = por %p113, %p114
    %p116 = scmp.ne.s32.totalorder %s105, %s106
    %p117 = scmp.eq.s32.totalorder %s15, 0
    %p118 = por %p116, %p117
    %p119 = scmp.ne.s32.totalorder %s105, %s106
    %p120 = scmp.eq.s32.totalorder %s16, 1
    %p121 = por %p119, %p120
    %p123 = scmp.ne.s32.totalorder %s106, %s122
    %p124 = scmp.eq.s32.totalorder %s16, 0
    %p125 = por %p123, %p124
    %s126 = ssub.s32 %s17, %s29
    %p127 = scmp.eq.s32.totalorder %s126, 0
    %s129 = sadd.s32 %s128, 1
    %s130 = scalar_select %p127, %s128, %s129
    %p133 = pneg %p127
    %p134 = scmp.eq.s32.totalorder %s10, 1
    %p135 = por %p133, %p134
    %p136 = scmp.ne.s32.totalorder %s128, %s131
    %p137 = scmp.eq.s32.totalorder %s10, 0
    %p138 = por %p136, %p137
    %p139 = scmp.ne.s32.totalorder %s128, %s131
    %p140 = scmp.eq.s32.totalorder %s15, 1
    %p141 = por %p139, %p140
    %p142 = scmp.ne.s32.totalorder %s131, %s132
    %p143 = scmp.eq.s32.totalorder %s15, 0
    %p144 = por %p142, %p143
    %p145 = scmp.ne.s32.totalorder %s131, %s132
    %p146 = scmp.eq.s32.totalorder %s16, 1
    %p147 = por %p145, %p146
    %p149 = scmp.ne.s32.totalorder %s132, %s148
    %p150 = scmp.eq.s32.totalorder %s16, 0
    %p151 = por %p149, %p150
    %p152 = scmp.le.s32.totalorder 1, %s10
    %p153 = scmp.lt.s32.totalorder %s10, 3
    %p154 = pnand %p152, %p153
    %p155 = pneg %p154
    // Predicated region
    $region9: #{_gcn_block_forward.1} parent=5 // pred_check
      _
    $region10: #{_gcn_block_forward.1} parent=5 // pred_check_branch
      %157 = sbr.rel (%p154) target = $region12
    $region11: #{_gcn_block_forward.1} parent=5 // pred_region
      %s158 = ssub.s32 %s10, 1
      // Predicated region
      $region13: #{_gcn_block_forward.1} parent=11 // pred_check
        %p159 = pneg %p71
      $region14: #{_gcn_block_forward.1} parent=11 // pred_check_branch
        %161 = sbr.rel (%p159) target = $region16
      $region15: #{_gcn_block_forward.1} parent=11 // pred_region
        _
      $region16: #{_gcn_block_forward.1} parent=11 // pred_fallthru
        _
      // Predicated region
      $region17: #{_gcn_block_forward.1} parent=11 // pred_check
        %p162 = pneg %p92
      $region18: #{_gcn_block_forward.1} parent=11 // pred_check_branch
        %164 = sbr.rel (%p162) target = $region20
      $region19: #{_gcn_block_forward.1} parent=11 // pred_region
        _
      $region20: #{_gcn_block_forward.1} parent=11 // pred_fallthru
        _
    $region12: #{_gcn_block_forward.1} parent=5 // pred_fallthru
      _
    %p165 = scmp.lt.s32.totalorder %s10, 2
    // Predicated region
    $region21: #{_gcn_block_forward.1} parent=5 // pred_check
      %p166 = pneg %p165
    $region22: #{_gcn_block_forward.1} parent=5 // pred_check_branch
      %168 = sbr.rel (%p166) target = $region24
    $region23: #{_gcn_block_forward.1} parent=5 // pred_region
      // Predicated region
      $region25: #{_gcn_block_forward.1} parent=23 // pred_check
        %p169 = pneg %p44
      $region26: #{_gcn_block_forward.1} parent=23 // pred_check_branch
        %171 = sbr.rel (%p169) target = $region28
      $region27: #{_gcn_block_forward.1} parent=23 // pred_region
        %s172 = smul.u32 8, %s17
        %p173 = scmp.lt.s32.totalorder %s172, 15
        %s174 = scalar_select %p173, %s172, 15
        %p175 = scmp.lt.s32.totalorder %s18, 0
        %s176 = scalar_select %p175, %s18, 0
        %s177 = sadd.s32 %s176, %s174
        %s178 = smul.addr %s177, 4
        %s179 = scalar_lea.vmem %s0, %s178
        %s180 = smul.u32 8, %s17
      $region28: #{_gcn_block_forward.1} parent=23 // pred_fallthru
        _
      // Predicated region
      $region29: #{_gcn_block_forward.1} parent=23 // pred_check
        %p181 = pneg %p112
      $region30: #{_gcn_block_forward.1} parent=23 // pred_check_branch
        %183 = sbr.rel (%p181) target = $region32
      $region31: #{_gcn_block_forward.1} parent=23 // pred_region
        %s184 = smul.u32 8, %s17
        %p185 = scmp.lt.s32.totalorder %s184, 15
        %s186 = scalar_select %p185, %s184, 15
        %s187 = smul.addr %s186, 4
        %s188 = scalar_lea.vmem %s3, %s187
        %s189 = smul.u32 8, %s17
      $region32: #{_gcn_block_forward.1} parent=23 // pred_fallthru
        _
    $region24: #{_gcn_block_forward.1} parent=5 // pred_fallthru
      _
    %p190 = scmp.le.s32.totalorder 1, %s10
    %p191 = scmp.lt.s32.totalorder %s10, 3
    %p192 = pnand %p190, %p191
    %p193 = pneg %p192
    // Predicated region
    $region33: #{_gcn_block_forward.1} parent=5 // pred_check
      _
    $region34: #{_gcn_block_forward.1} parent=5 // pred_check_branch
      %195 = sbr.rel (%p192) target = $region36
    $region35: #{_gcn_block_forward.1} parent=5 // pred_region
      %s196 = ssub.s32 %s10, 1
      %s197 = smul.u32 8, %s19
      %p198 = scmp.lt.s32.totalorder %s197, 15
      %s199 = scalar_select %p198, %s197, 15
      %p200 = scmp.lt.s32.totalorder %s20, 0
      %s201 = scalar_select %p200, %s20, 0
      %s202 = sadd.s32 %s201, %s199
      %s203 = smul.addr %s202, 4
      %s204 = scalar_lea.vmem %s0, %s203
      %p205 = pneg %p50
      %p206 = pneg %p47
      %p207 = pneg %p71
      %p208 = pneg %p68
      %p209 = pneg %p92
      %p210 = pneg %p89
      %s211 = smul.u32 8, %s19
      %p212 = scmp.lt.s32.totalorder %s211, 15
      %s213 = scalar_select %p212, %s211, 15
      %s214 = smul.addr %s213, 4
      %s215 = scalar_lea.vmem %s3, %s214
      %p216 = pneg %p118
      %p217 = pneg %p115
      %p218 = pneg %p144
      %p219 = pneg %p141
      %s220 = smul.u32 8, %s19
      %p221 = scmp.lt.s32.totalorder %s220, 15
      %s222 = scalar_select %p221, %s220, 15
      %s223 = smul.addr %s222, 8
      %s224 = scalar_lea.vmem %s4, %s223
      %s225 = smul.u32 8, %s19
      %p226 = scmp.lt.s32.totalorder %s225, 15
      %s227 = scalar_select %p226, %s225, 15
      %p228 = scmp.lt.s32.totalorder %s20, 0
      %s229 = scalar_select %p228, %s20, 0
      %s230 = sadd.s32 %s229, %s227
      %s231 = smul.addr %s230, 4
      %s232 = scalar_lea.vmem %s0, %s231
      %s233 = smul.u32 8, %s19
      %s234 = smul.u32 8, %s19
      %p235 = scmp.lt.s32.totalorder %s234, 15
      %s236 = scalar_select %p235, %s234, 15
      %s237 = smul.addr %s236, 4
      %s238 = scalar_lea.vmem %s3, %s237
      %s239 = smul.u32 8, %s19
      %s240 = smul.u32 8, %s19
      %p241 = scmp.lt.s32.totalorder %s240, 15
      %s242 = scalar_select %p241, %s240, 15
      %s243 = smul.addr %s242, 8
      %s244 = scalar_lea.vmem %s4, %s243
      %s245 = smul.u32 8, %s19
      %p246 = scmp.eq.s32.totalorder %s20, 0
      // Predicated region
      $region37: #{_gcn_block_forward.1} parent=35 // pred_check
        %p247 = pneg %p246
      $region38: #{_gcn_block_forward.1} parent=35 // pred_check_branch
        %249 = sbr.rel (%p247) target = $region40
      $region39: #{_gcn_block_forward.1} parent=35 // pred_region
        %250 = vst [vmem:[%s244] sm:$0xff] 0.0
        %251 = vst [vmem:[%s244 + $0x8] sm:$0xff] 0.0
        %252 = vst [vmem:[%s244 + $0x10] sm:$0xff] 0.0
        %253 = vst [vmem:[%s244 + $0x18] sm:$0xff] 0.0
        %254 = vst [vmem:[%s244 + $0x20] sm:$0xff] 0.0
        %255 = vst [vmem:[%s244 + $0x28] sm:$0xff] 0.0
        %256 = vst [vmem:[%s244 + $0x30] sm:$0xff] 0.0
        %257 = vst [vmem:[%s244 + $0x38] sm:$0xff] 0.0
      $region40: #{_gcn_block_forward.1} parent=35 // pred_fallthru
        _
      %s258 = smul.u32 %s20, 128
      %s259 = sshra.s32 %s258, 3
      %s260 = sand.u32 %s258, 7
      %s261 = smul.addr %s259, 4
      %s262 = scalar_lea.vmem %s1, %s261
      %v263 = vld [vmem:[%s262] sm:$0xf]
      %v264 = vld [vmem:[%s262 + $0x4] sm:$0xf]
      %v265 = vld [vmem:[%s262 + $0x8] sm:$0xf]
      %v266 = vld [vmem:[%s262 + $0xc] sm:$0xf]
      %v267 = vld [vmem:[%s262 + $0x10] sm:$0xf]
      %v268 = vld [vmem:[%s262 + $0x14] sm:$0xf]
      %v269 = vld [vmem:[%s262 + $0x18] sm:$0xf]
      %v270 = vld [vmem:[%s262 + $0x1c] sm:$0xf]
      %v271 = vld [vmem:[%s262 + $0x20] sm:$0xf]
      %v272 = vld [vmem:[%s262 + $0x24] sm:$0xf]
      %v273 = vld [vmem:[%s262 + $0x28] sm:$0xf]
      %v274 = vld [vmem:[%s262 + $0x2c] sm:$0xf]
      %v275 = vld [vmem:[%s262 + $0x30] sm:$0xf]
      %v276 = vld [vmem:[%s262 + $0x34] sm:$0xf]
      %v277 = vld [vmem:[%s262 + $0x38] sm:$0xf]
      %v278 = vld [vmem:[%s262 + $0x3c] sm:$0xf]
      %v279 = vld [vmem:[%s244] sm:$0xff]
      %v280 = vld [vmem:[%s244 + $0x8] sm:$0xff]
      %v281 = vld [vmem:[%s244 + $0x10] sm:$0xff]
      %v282 = vld [vmem:[%s244 + $0x18] sm:$0xff]
      %v283 = vld [vmem:[%s244 + $0x20] sm:$0xff]
      %v284 = vld [vmem:[%s244 + $0x28] sm:$0xff]
      %v285 = vld [vmem:[%s244 + $0x30] sm:$0xff]
      %v286 = vld [vmem:[%s244 + $0x38] sm:$0xff]
      %v287 = vld [vmem:[%s232] sm:$0xf]
      %v288 = vld [vmem:[%s232 + $0x4] sm:$0xf]
      %v289 = vld [vmem:[%s232 + $0x8] sm:$0xf]
      %v290 = vld [vmem:[%s232 + $0xc] sm:$0xf]
      %v291 = vld [vmem:[%s232 + $0x10] sm:$0xf]
      %v292 = vld [vmem:[%s232 + $0x14] sm:$0xf]
      %v293 = vld [vmem:[%s232 + $0x18] sm:$0xf]
      %v294 = vld [vmem:[%s232 + $0x1c] sm:$0xf]
      %v303 = vunpack.c.l.b16 %v287
      %v304 = vunpack.c.l.b16 %v288
      %v305 = vunpack.c.l.b16 %v289
      %v306 = vunpack.c.l.b16 %v290
      %v307 = vunpack.c.l.b16 %v291
      %v308 = vunpack.c.l.b16 %v292
      %v309 = vunpack.c.l.b16 %v293
      %v310 = vunpack.c.l.b16 %v294
      %v311 = vpack.c.b16 %v304, %v303
      %v312 = vpack.c.b16 %v306, %v305
      %v313 = vpack.c.b16 %v308, %v307
      %v314 = vpack.c.b16 %v310, %v309
      %v335 = vunpack.c.l.b16 %v263
      %v336 = vunpack.c.l.b16 %v264
      %v337 = vunpack.c.l.b16 %v265
      %v338 = vunpack.c.l.b16 %v266
      %v339 = vunpack.c.l.b16 %v267
      %v340 = vunpack.c.l.b16 %v268
      %v341 = vunpack.c.l.b16 %v269
      %v342 = vunpack.c.l.b16 %v270
      %v343 = vunpack.c.l.b16 %v271
      %v344 = vunpack.c.l.b16 %v272
      %v345 = vunpack.c.l.b16 %v273
      %v346 = vunpack.c.l.b16 %v274
      %v347 = vunpack.c.l.b16 %v275
      %v348 = vunpack.c.l.b16 %v276
      %v349 = vunpack.c.l.b16 %v277
      %v350 = vunpack.c.l.b16 %v278
      %v351 = vpack.c.b16 %v336, %v335
      %v352 = vpack.c.b16 %v338, %v337
      %v353 = vpack.c.b16 %v340, %v339
      %v354 = vpack.c.b16 %v342, %v341
      %v355 = vpack.c.b16 %v344, %v343
      %v356 = vpack.c.b16 %v346, %v345
      %v357 = vpack.c.b16 %v348, %v347
      %v358 = vpack.c.b16 %v350, %v349
      %367 = vmatpush.bf16.msra.mxu0 %v358
      %368 = vmatpush.bf16.msra.mxu0 %v357
      %369 = vmatpush.bf16.msra.mxu0 %v356
      %370 = vmatpush.bf16.msra.mxu0 %v355
      %371 = vmatpush.bf16.msra.mxu0 %v354
      %372 = vmatpush.bf16.msra.mxu0 %v353
      %373 = vmatpush.bf16.msra.mxu0 %v352
      %374 = vmatpush.bf16.msra.mxu0 %v351
      %375 = vmatmul.bf16.gmra.mxu0 %v311
      %v376 = vpop.f32.mrf.mxu0
      %v377 = vadd.f32 0.0, %v376
      %v378 = vpop.f32.mrf.mxu0
      %v379 = vadd.f32 0.0, %v378
      %380 = vmatmul.bf16.gmra.mxu0 %v312
      %v381 = vpop.f32.mrf.mxu0
      %v382 = vadd.f32 0.0, %v381
      %v383 = vpop.f32.mrf.mxu0
      %v384 = vadd.f32 0.0, %v383
      %385 = vmatmul.bf16.gmra.mxu0 %v313
      %v386 = vpop.f32.mrf.mxu0
      %v387 = vadd.f32 0.0, %v386
      %v388 = vpop.f32.mrf.mxu0
      %v389 = vadd.f32 0.0, %v388
      %390 = vmatmul.bf16.gmra.mxu0 %v314
      %v391 = vpop.f32.mrf.mxu0
      %v392 = vadd.f32 0.0, %v391
      %v393 = vpop.f32.mrf.mxu0
      %v394 = vadd.f32 0.0, %v393
      %395 = vdwg.mxu0
      %v396 = vadd.f32 %v279, %v377
      %v397 = vadd.f32 %v280, %v379
      %v398 = vadd.f32 %v281, %v382
      %v399 = vadd.f32 %v282, %v384
      %v400 = vadd.f32 %v283, %v387
      %v401 = vadd.f32 %v284, %v389
      %v402 = vadd.f32 %v285, %v392
      %v403 = vadd.f32 %v286, %v394
      %404 = vst [vmem:[%s244] sm:$0xff] %v396
      %405 = vst [vmem:[%s244 + $0x8] sm:$0xff] %v397
      %406 = vst [vmem:[%s244 + $0x10] sm:$0xff] %v398
      %407 = vst [vmem:[%s244 + $0x18] sm:$0xff] %v399
      %408 = vst [vmem:[%s244 + $0x20] sm:$0xff] %v400
      %409 = vst [vmem:[%s244 + $0x28] sm:$0xff] %v401
      %410 = vst [vmem:[%s244 + $0x30] sm:$0xff] %v402
      %411 = vst [vmem:[%s244 + $0x38] sm:$0xff] %v403
      // Predicated region
      $region41: #{_gcn_block_forward.1} parent=35 // pred_check
        %p412 = pneg %p246
      $region42: #{_gcn_block_forward.1} parent=35 // pred_check_branch
        %414 = sbr.rel (%p412) target = $region44
      $region43: #{_gcn_block_forward.1} parent=35 // pred_region
        %v415 = vld [vmem:[%s244] sm:$0xff]
        %v416 = vld [vmem:[%s244 + $0x8] sm:$0xff]
        %v417 = vld [vmem:[%s244 + $0x10] sm:$0xff]
        %v418 = vld [vmem:[%s244 + $0x18] sm:$0xff]
        %v419 = vld [vmem:[%s244 + $0x20] sm:$0xff]
        %v420 = vld [vmem:[%s244 + $0x28] sm:$0xff]
        %v421 = vld [vmem:[%s244 + $0x30] sm:$0xff]
        %v422 = vld [vmem:[%s244 + $0x38] sm:$0xff]
        %v423 = vld [vmem:[%s2] sm:$0x1]
        %v425 = vperm.slane %v423, 0
        %v427 = vadd.f32 %v415, %v425
        %v428 = vadd.f32 %v416, %v425
        %v429 = vadd.f32 %v417, %v425
        %v430 = vadd.f32 %v418, %v425
        %v431 = vadd.f32 %v419, %v425
        %v432 = vadd.f32 %v420, %v425
        %v433 = vadd.f32 %v421, %v425
        %v434 = vadd.f32 %v422, %v425
        %v435 = vmax.f32 %v427, 0.0
        %v436 = vmax.f32 %v428, 0.0
        %v437 = vmax.f32 %v429, 0.0
        %v438 = vmax.f32 %v430, 0.0
        %v439 = vmax.f32 %v431, 0.0
        %v440 = vmax.f32 %v432, 0.0
        %v441 = vmax.f32 %v433, 0.0
        %v442 = vmax.f32 %v434, 0.0
        %v443 = vld [vmem:[%s238] sm:$0xf]
        %v444 = vld [vmem:[%s238 + $0x4] sm:$0xf]
        %v445 = vld [vmem:[%s238 + $0x8] sm:$0xf]
        %v446 = vld [vmem:[%s238 + $0xc] sm:$0xf]
        %v447 = vld [vmem:[%s238 + $0x10] sm:$0xf]
        %v448 = vld [vmem:[%s238 + $0x14] sm:$0xf]
        %v449 = vld [vmem:[%s238 + $0x18] sm:$0xf]
        %v450 = vld [vmem:[%s238 + $0x1c] sm:$0xf]
        %v451 = vunpack.c.l.bf16 %v443
        %v452 = vunpack.c.l.bf16 %v444
        %v453 = vunpack.c.l.bf16 %v445
        %v454 = vunpack.c.l.bf16 %v446
        %v455 = vunpack.c.l.bf16 %v447
        %v456 = vunpack.c.l.bf16 %v448
        %v457 = vunpack.c.l.bf16 %v449
        %v458 = vunpack.c.l.bf16 %v450
        %v459 = vmul.f32 %v451, 2.0
        %v460 = vmul.f32 %v452, 2.0
        %v461 = vmul.f32 %v453, 2.0
        %v462 = vmul.f32 %v454, 2.0
        %v463 = vmul.f32 %v455, 2.0
        %v464 = vmul.f32 %v456, 2.0
        %v465 = vmul.f32 %v457, 2.0
        %v466 = vmul.f32 %v458, 2.0
        %v467 = vmul.f32 %v435, %v459
        %v468 = vmul.f32 %v436, %v460
        %v469 = vmul.f32 %v437, %v461
        %v470 = vmul.f32 %v438, %v462
        %v471 = vmul.f32 %v439, %v463
        %v472 = vmul.f32 %v440, %v464
        %v473 = vmul.f32 %v441, %v465
        %v474 = vmul.f32 %v442, %v466
        %475 = vst [vmem:[%s244] sm:$0xff] %v467
        %476 = vst [vmem:[%s244 + $0x8] sm:$0xff] %v468
        %477 = vst [vmem:[%s244 + $0x10] sm:$0xff] %v469
        %478 = vst [vmem:[%s244 + $0x18] sm:$0xff] %v470
        %479 = vst [vmem:[%s244 + $0x20] sm:$0xff] %v471
        %480 = vst [vmem:[%s244 + $0x28] sm:$0xff] %v472
        %481 = vst [vmem:[%s244 + $0x30] sm:$0xff] %v473
        %482 = vst [vmem:[%s244 + $0x38] sm:$0xff] %v474
      $region44: #{_gcn_block_forward.1} parent=35 // pred_fallthru
        _
      %s483 = smul.u32 8, %s19
      %p484 = scmp.lt.s32.totalorder %s483, 15
      %s485 = scalar_select %p484, %s483, 15
      %s486 = smul.addr %s485, 8
      %s487 = scalar_lea.vmem %s4, %s486
      // Predicated region
      $region45: #{_gcn_block_forward.1} parent=35 // pred_check
        %p488 = pneg %p141
      $region46: #{_gcn_block_forward.1} parent=35 // pred_check_branch
        %490 = sbr.rel (%p488) target = $region48
      $region47: #{_gcn_block_forward.1} parent=35 // pred_region
        %s491 = smul.u32 8, %s19
      $region48: #{_gcn_block_forward.1} parent=35 // pred_fallthru
        _
    $region36: #{_gcn_block_forward.1} parent=5 // pred_fallthru
      _
    %p492 = scmp.le.s32.totalorder 2, %s10
    // Predicated region
    $region49: #{_gcn_block_forward.1} parent=5 // pred_check
      %p493 = pneg %p492
    $region50: #{_gcn_block_forward.1} parent=5 // pred_check_branch
      %495 = sbr.rel (%p493) target = $region52
    $region51: #{_gcn_block_forward.1} parent=5 // pred_region
      %s496 = ssub.s32 %s10, 2
      // Predicated region
      $region53: #{_gcn_block_forward.1} parent=51 // pred_check
        %p497 = pneg %p147
      $region54: #{_gcn_block_forward.1} parent=51 // pred_check_branch
        %499 = sbr.rel (%p497) target = $region56
      $region55: #{_gcn_block_forward.1} parent=51 // pred_region
        %s500 = smul.u32 8, %s21
        %p501 = scmp.lt.s32.totalorder %s500, 15
        %s502 = scalar_select %p501, %s500, 15
        %s503 = smul.addr %s502, 8
        %s504 = scalar_lea.vmem %s4, %s503
      $region56: #{_gcn_block_forward.1} parent=51 // pred_fallthru
        _
    $region52: #{_gcn_block_forward.1} parent=5 // pred_fallthru
      _
  $region6: #{_gcn_block_forward.1} parent=0 // loop_footer
    %s14 = sadd.s32 1, %s10
  $region7: #{_gcn_block_forward.1} parent=0 // loop_footer_branch
    %9 = sbr.rel target = $region3
  $region8: #{_gcn_block_forward.1} parent=0 // loop_exit
    _

</llo_original>
